<compile_context>
chip_gen: v7x
topology: tpu7x:2x2x1
jax: 0.10.0
libtpu: 0.0.40
codegen_flags: <defaults>
</compile_context>

<pallas_src>
import numpy as np
import jax
import jax.numpy as jnp
from jax.experimental import pallas as pl
from jax.experimental.pallas import tpu as pltpu

# ---- model hyper-parameters (small, consistent with the module) ----
D_MODEL      = 32   # LSTMCell input size
HIDDEN_SIZE  = 32   # LSTMCell hidden size
FEATURE_NUMS = 8    # "batch" of the LSTMCell / rows of init_ops_h, init_ops_c
NUM_OPS      = 16   # decoder output size


# --------------------------------------------------------------------------
# Pallas kernel: one LSTMCell step + linear decoder, whole problem per call.
# --------------------------------------------------------------------------
def qnet_ops_kernel(x_ref, h0_ref, c0_ref,
                    wih_ref, whh_ref, bg_ref, wd_ref, bd_ref,
                    h1_ref, c1_ref, logits_ref):
    H = HIDDEN_SIZE

    x  = x_ref[...]    # (N, D_MODEL)  f32
    h0 = h0_ref[...]   # (N, H)        f32
    c0 = c0_ref[...]   # (N, H)        f32

    # All four LSTM gates at once: output lane width is 4H = 128 (one vreg).
    gates = (jnp.dot(x,  wih_ref[...], preferred_element_type=jnp.float32)
             + jnp.dot(h0, whh_ref[...], preferred_element_type=jnp.float32)
             + bg_ref[...])                 # (N, 4H)

    # PyTorch LSTMCell gate order: input, forget, cell(g), output.
    # Static lane slices of the single 128-lane gates vreg.
    i_g = jax.nn.sigmoid(gates[:, 0 * H:1 * H])
    f_g = jax.nn.sigmoid(gates[:, 1 * H:2 * H])
    g_g = jnp.tanh(       gates[:, 2 * H:3 * H])
    o_g = jax.nn.sigmoid(gates[:, 3 * H:4 * H])

    c1 = f_g * c0 + i_g * g_g
    h1 = o_g * jnp.tanh(c1)

    logits = jnp.dot(h1, wd_ref[...], preferred_element_type=jnp.float32) + bd_ref[...]

    h1_ref[...]     = h1
    c1_ref[...]     = c1
    logits_ref[...] = logits


# --------------------------------------------------------------------------
# pallas_call built once (static shapes), then jitted for cheap dispatch.
# --------------------------------------------------------------------------
_VMEM = pl.BlockSpec(memory_space=pltpu.MemorySpace.VMEM)

_qnet_ops_call = pl.pallas_call(
    qnet_ops_kernel,
    out_shape=(
        jax.ShapeDtypeStruct((FEATURE_NUMS, HIDDEN_SIZE), jnp.float32),
        jax.ShapeDtypeStruct((FEATURE_NUMS, HIDDEN_SIZE), jnp.float32),
        jax.ShapeDtypeStruct((FEATURE_NUMS, NUM_OPS), jnp.float32),
    ),
    in_specs=[_VMEM] * 8,
    out_specs=(_VMEM, _VMEM, _VMEM),
    cost_estimate=pl.CostEstimate(
        # 2*N*D*4H + 2*N*H*4H + 2*N*H*num_ops
        flops=2 * FEATURE_NUMS * (D_MODEL + HIDDEN_SIZE) * 4 * HIDDEN_SIZE
              + 2 * FEATURE_NUMS * HIDDEN_SIZE * NUM_OPS,
        transcendentals=5 * FEATURE_NUMS * HIDDEN_SIZE,   # 3 sigmoid + 2 tanh
        bytes_accessed=4 * (FEATURE_NUMS * (D_MODEL + 4 * HIDDEN_SIZE + 3 * HIDDEN_SIZE + NUM_OPS)
                            + (D_MODEL + HIDDEN_SIZE) * 4 * HIDDEN_SIZE
                            + 4 * HIDDEN_SIZE + HIDDEN_SIZE * NUM_OPS + NUM_OPS),
    ),
)


@jax.jit
def _qnet_ops_step(input_data, h0, c0, w_ih_t, w_hh_t, b_gates, w_dec_t, b_dec):
    return _qnet_ops_call(input_data, h0, c0, w_ih_t, w_hh_t, b_gates, w_dec_t, b_dec)


# --------------------------------------------------------------------------
# Host-side wrapper mirroring QNet_ops.forward
# --------------------------------------------------------------------------
def pack_params(raw):
    """Pre-pack PyTorch-layout parameters into kernel-friendly (in, out) layouts."""
    (w_ih, w_hh, b_ih, b_hh, w_dec, b_dec, init_h, init_c) = raw
    w_ih_t  = jnp.asarray(w_ih.T)                                   # (D, 4H)
    w_hh_t  = jnp.asarray(w_hh.T)                                   # (H, 4H)
    b_gates = (b_ih + b_hh).reshape(1, 4 * HIDDEN_SIZE)             # fused bias
    w_dec_t = jnp.asarray(w_dec.T)                                  # (H, num_ops)
    b_dec2  = b_dec.reshape(1, NUM_OPS)
    return (w_ih_t, w_hh_t, b_gates, w_dec_t, b_dec2, init_h, init_c)


def qnet_ops_forward(input_data, res_h_c_t_list, packed_params):
    (w_ih_t, w_hh_t, b_gates, w_dec_t, b_dec, init_h, init_c) = packed_params

    # `if res_h_c_t_list is None: use init hidden` — host-side Python branch,
    # identical semantics to the module (init_ops_h/c are full-shape params).
    if res_h_c_t_list is None:
        h0, c0 = init_h, init_c
    else:
        h0, c0 = res_h_c_t_list[0]

    h1, c1, logits = _qnet_ops_step(input_data, h0, c0,
                                    w_ih_t, w_hh_t, b_gates, w_dec_t, b_dec)

    res_h_c_t_list_out = [(h1, c1)]
    ori_res_h_c_t_list = [(h0, c0)]
    return res_h_c_t_list_out, logits, ori_res_h_c_t_list


# --------------------------------------------------------------------------
# Parameters (deterministic, PyTorch init: uniform(-0.1, 0.1), decoder bias 0)
# --------------------------------------------------------------------------
def make_params(key):
    ks = jax.random.split(key, 7)
    u = lambda k, shape: jax.random.uniform(k, shape, jnp.float32, -0.1, 0.1)
    w_ih   = u(ks[0], (4 * HIDDEN_SIZE, D_MODEL))      # LSTMCell weight_ih
    w_hh   = u(ks[1], (4 * HIDDEN_SIZE, HIDDEN_SIZE))  # LSTMCell weight_hh
    b_ih   = u(ks[2], (4 * HIDDEN_SIZE,))
    b_hh   = u(ks[3], (4 * HIDDEN_SIZE,))
    w_dec  = u(ks[4], (NUM_OPS, HIDDEN_SIZE))          # ops_decoder weight
    b_dec  = jnp.zeros((NUM_OPS,), jnp.float32)        # ops_decoder.bias.fill_(0)
    init_h = u(ks[5], (FEATURE_NUMS, HIDDEN_SIZE))     # init_ops_h
    init_c = u(ks[6], (FEATURE_NUMS, HIDDEN_SIZE))     # init_ops_c
    return (w_ih, w_hh, b_ih, b_hh, w_dec, b_dec, init_h, init_c)


# --------------------------------------------------------------------------
# Pure-JAX reference mirroring the PyTorch forward
# --------------------------------------------------------------------------
def qnet_ops_ref(input_data, res_h_c_t_list, raw_params):
    (w_ih, w_hh, b_ih, b_hh, w_dec, b_dec, init_h, init_c) = raw_params
    if res_h_c_t_list is None:
        h0, c0 = init_h, init_c
    else:
        h0, c0 = res_h_c_t_list[0]
    gates = input_data @ w_ih.T + b_ih + h0 @ w_hh.T + b_hh
    i_g, f_g, g_g, o_g = jnp.split(gates, 4, axis=-1)
    i_g = jax.nn.sigmoid(i_g)
    f_g = jax.nn.sigmoid(f_g)
    g_g = jnp.tanh(g_g)
    o_g = jax.nn.sigmoid(o_g)
    c1 = f_g * c0 + i_g * g_g
    h1 = o_g * jnp.tanh(c1)
    logits = h1 @ w_dec.T + b_dec
    return [(h1, c1)], logits, [(h0, c0)]


if __name__ == "__main__":
    key = jax.random.PRNGKey(0)
    k_x, k_p = jax.random.split(key)

    input_data = jax.random.normal(k_x, (FEATURE_NUMS, D_MODEL), jnp.float32)
    raw_params = make_params(k_p)
    packed = pack_params(raw_params)

    # forward with res_h_c_t_list=None (uses the learned init hidden state)
    res_list, logits, ori_list = qnet_ops_forward(input_data, None, packed)
    (h1, c1) = res_list[0]
    h1, c1, logits = jax.block_until_ready((h1, c1, logits))

    # reference check
    ref_res, ref_logits, ref_ori = qnet_ops_ref(input_data, None, raw_params)
    (rh1, rc1) = ref_res[0]
    np.testing.assert_allclose(np.asarray(h1), np.asarray(rh1), rtol=1e-5, atol=1e-5)
    np.testing.assert_allclose(np.asarray(c1), np.asarray(rc1), rtol=1e-5, atol=1e-5)
    np.testing.assert_allclose(np.asarray(logits), np.asarray(ref_logits),
                               rtol=1e-5, atol=1e-5)
    # ori_res_h_c_t_list is a passthrough of the previous (h, c)
    np.testing.assert_allclose(np.asarray(ori_list[0][0]),
                               np.asarray(ref_ori[0][0]), rtol=0, atol=0)

    # second step: feed the new state back in (exercises the non-None branch
    # and the jit cache — same executable, no retrace)
    res_list2, logits2, _ = qnet_ops_forward(input_data, res_list, packed)
    jax.block_until_ready(logits2)
    ref_res2, ref_logits2, _ = qnet_ops_ref(input_data, ref_res, raw_params)
    np.testing.assert_allclose(np.asarray(logits2), np.asarray(ref_logits2),
                               rtol=1e-5, atol=1e-5)

    print("KERNEL_OK")
</pallas_src>

<mosaic_0001>
module attributes {stable_mosaic.version = 11 : i64} {
  func.func @qnet_ops_kernel(%arg0: memref<8x32xf32, #tpu.memory_space<vmem>>, %arg1: memref<8x32xf32, #tpu.memory_space<vmem>>, %arg2: memref<8x32xf32, #tpu.memory_space<vmem>>, %arg3: memref<32x128xf32, #tpu.memory_space<vmem>>, %arg4: memref<32x128xf32, #tpu.memory_space<vmem>>, %arg5: memref<1x128xf32, #tpu.memory_space<vmem>>, %arg6: memref<32x16xf32, #tpu.memory_space<vmem>>, %arg7: memref<1x16xf32, #tpu.memory_space<vmem>>, %arg8: memref<8x32xf32, #tpu.memory_space<vmem>>, %arg9: memref<8x32xf32, #tpu.memory_space<vmem>>, %arg10: memref<8x16xf32, #tpu.memory_space<vmem>>) attributes {dimension_semantics = [], scalar_prefetch = 0 : i64, scratch_operands = 0 : i64, tpu.core_type = #tpu.core_type<tc>} {
    %c0 = arith.constant 0 : index
    %c0_0 = arith.constant 0 : index
    %0 = vector.load %arg0[%c0, %c0_0] : memref<8x32xf32, #tpu.memory_space<vmem>>, vector<8x32xf32>
    %c0_1 = arith.constant 0 : index
    %c0_2 = arith.constant 0 : index
    %1 = vector.load %arg1[%c0_1, %c0_2] : memref<8x32xf32, #tpu.memory_space<vmem>>, vector<8x32xf32>
    %c0_3 = arith.constant 0 : index
    %c0_4 = arith.constant 0 : index
    %2 = vector.load %arg2[%c0_3, %c0_4] : memref<8x32xf32, #tpu.memory_space<vmem>>, vector<8x32xf32>
    %c0_5 = arith.constant 0 : index
    %c0_6 = arith.constant 0 : index
    %3 = vector.load %arg3[%c0_5, %c0_6] : memref<32x128xf32, #tpu.memory_space<vmem>>, vector<32x128xf32>
    %cst = arith.constant dense<0.000000e+00> : vector<8x128xf32>
    %4 = tpu.matmul %0, %3, %cst {dimension_numbers = #tpu.dot_dimension_numbers<[1], [0], [0], [1], [0, 0, 1, 1], [], []>} : vector<8x32xf32>, vector<32x128xf32>, vector<8x128xf32> -> vector<8x128xf32>
    %c0_7 = arith.constant 0 : index
    %c0_8 = arith.constant 0 : index
    %5 = vector.load %arg4[%c0_7, %c0_8] : memref<32x128xf32, #tpu.memory_space<vmem>>, vector<32x128xf32>
    %cst_9 = arith.constant dense<0.000000e+00> : vector<8x128xf32>
    %6 = tpu.matmul %1, %5, %cst_9 {dimension_numbers = #tpu.dot_dimension_numbers<[1], [0], [0], [1], [0, 0, 1, 1], [], []>} : vector<8x32xf32>, vector<32x128xf32>, vector<8x128xf32> -> vector<8x128xf32>
    %7 = arith.addf %4, %6 : vector<8x128xf32>
    %c0_10 = arith.constant 0 : index
    %c0_11 = arith.constant 0 : index
    %8 = vector.load %arg5[%c0_10, %c0_11] : memref<1x128xf32, #tpu.memory_space<vmem>>, vector<1x128xf32>
    %9 = vector.broadcast %8 : vector<1x128xf32> to vector<8x128xf32>
    %10 = arith.addf %7, %9 : vector<8x128xf32>
    %11 = vector.extract_strided_slice %10 {offsets = [0, 0], sizes = [8, 32], strides = [1, 1]} : vector<8x128xf32> to vector<8x32xf32>
    %12 = arith.negf %11 : vector<8x32xf32>
    %13 = math.exp %12 : vector<8x32xf32>
    %cst_12 = arith.constant 1.000000e+00 : f32
    %14 = vector.broadcast %cst_12 : f32 to vector<8x32xf32>
    %15 = arith.addf %14, %13 : vector<8x32xf32>
    %16 = arith.divf %14, %15 : vector<8x32xf32>
    %17 = vector.extract_strided_slice %10 {offsets = [0, 32], sizes = [8, 32], strides = [1, 1]} : vector<8x128xf32> to vector<8x32xf32>
    %18 = arith.negf %17 : vector<8x32xf32>
    %19 = math.exp %18 : vector<8x32xf32>
    %cst_13 = arith.constant 1.000000e+00 : f32
    %20 = vector.broadcast %cst_13 : f32 to vector<8x32xf32>
    %21 = arith.addf %20, %19 : vector<8x32xf32>
    %22 = arith.divf %20, %21 : vector<8x32xf32>
    %23 = vector.extract_strided_slice %10 {offsets = [0, 64], sizes = [8, 32], strides = [1, 1]} : vector<8x128xf32> to vector<8x32xf32>
    %24 = math.tanh %23 : vector<8x32xf32>
    %25 = vector.extract_strided_slice %10 {offsets = [0, 96], sizes = [8, 32], strides = [1, 1]} : vector<8x128xf32> to vector<8x32xf32>
    %26 = arith.negf %25 : vector<8x32xf32>
    %27 = math.exp %26 : vector<8x32xf32>
    %cst_14 = arith.constant 1.000000e+00 : f32
    %28 = vector.broadcast %cst_14 : f32 to vector<8x32xf32>
    %29 = arith.addf %28, %27 : vector<8x32xf32>
    %30 = arith.divf %28, %29 : vector<8x32xf32>
    %31 = arith.mulf %22, %2 : vector<8x32xf32>
    %32 = arith.mulf %16, %24 : vector<8x32xf32>
    %33 = arith.addf %31, %32 : vector<8x32xf32>
    %34 = math.tanh %33 : vector<8x32xf32>
    %35 = arith.mulf %30, %34 : vector<8x32xf32>
    %c0_15 = arith.constant 0 : index
    %c0_16 = arith.constant 0 : index
    %36 = vector.load %arg6[%c0_15, %c0_16] : memref<32x16xf32, #tpu.memory_space<vmem>>, vector<32x16xf32>
    %cst_17 = arith.constant dense<0.000000e+00> : vector<8x16xf32>
    %37 = tpu.matmul %35, %36, %cst_17 {dimension_numbers = #tpu.dot_dimension_numbers<[1], [0], [0], [1], [0, 0, 1, 1], [], []>} : vector<8x32xf32>, vector<32x16xf32>, vector<8x16xf32> -> vector<8x16xf32>
    %c0_18 = arith.constant 0 : index
    %c0_19 = arith.constant 0 : index
    %38 = vector.load %arg7[%c0_18, %c0_19] : memref<1x16xf32, #tpu.memory_space<vmem>>, vector<1x16xf32>
    %39 = vector.broadcast %38 : vector<1x16xf32> to vector<8x16xf32>
    %40 = arith.addf %37, %39 : vector<8x16xf32>
    %c0_20 = arith.constant 0 : index
    %c0_21 = arith.constant 0 : index
    %41 = vector.load %arg8[%c0_20, %c0_21] : memref<8x32xf32, #tpu.memory_space<vmem>>, vector<8x32xf32>
    tpu.vector_store %arg8[%c0_20, %c0_21], %35 {strides = array<i32>} : memref<8x32xf32, #tpu.memory_space<vmem>>, vector<8x32xf32>,
    %c0_22 = arith.constant 0 : index
    %c0_23 = arith.constant 0 : index
    %42 = vector.load %arg9[%c0_22, %c0_23] : memref<8x32xf32, #tpu.memory_space<vmem>>, vector<8x32xf32>
    tpu.vector_store %arg9[%c0_22, %c0_23], %33 {strides = array<i32>} : memref<8x32xf32, #tpu.memory_space<vmem>>, vector<8x32xf32>,
    %c0_24 = arith.constant 0 : index
    %c0_25 = arith.constant 0 : index
    %43 = vector.load %arg10[%c0_24, %c0_25] : memref<8x16xf32, #tpu.memory_space<vmem>>, vector<8x16xf32>
    tpu.vector_store %arg10[%c0_24, %c0_25], %40 {strides = array<i32>} : memref<8x16xf32, #tpu.memory_space<vmem>>, vector<8x16xf32>,
    return
  }
}

</mosaic_0001>

<llo_original>
// kernel: _qnet_ops_step.1
$region0: #{_qnet_ops_step.1}
  #allocation0 [shape = 'u32[]', space=smem, size = 0x4, offset = 0x4, fixed_abs, tag = 'smem constant byte address 0x4 - core index']
  #allocation1 [shape = 'u32[144,128]{1,0:T(1,128)}', space=vmem, size = 0x12000, scoped, tag = 'internal scratch']
  %s0 = inlined_call_operand.vmem [shape: f32[8,32], index: 0, kind: input, shape index: {}]
  %s1 = inlined_call_operand.vmem [shape: f32[8,32], index: 1, kind: input, shape index: {}]
  %s2 = inlined_call_operand.hbm [shape: f32[8,32], index: 2, kind: input, shape index: {}]
  %s3 = inlined_call_operand.vmem [shape: f32[32,128], index: 3, kind: input, shape index: {}]
  %s4 = inlined_call_operand.hbm [shape: f32[32,128], index: 4, kind: input, shape index: {}]
  %s5 = inlined_call_operand.vmem [shape: f32[1,128], index: 5, kind: input, shape index: {}]
  %s6 = inlined_call_operand.vmem [shape: f32[32,16], index: 6, kind: input, shape index: {}]
  %s7 = inlined_call_operand.vmem [shape: f32[1,16], index: 7, kind: input, shape index: {}]
  %s8 = inlined_call_operand.hbm [shape: f32[8,32], index: 8, kind: output, shape index: {0}]
  %s9 = inlined_call_operand.hbm [shape: f32[8,32], index: 9, kind: output, shape index: {1}]
  %s10 = inlined_call_operand.hbm [shape: f32[8,16], index: 10, kind: output, shape index: {2}]
  %11 = xla_tuple %s8, %s9, %s10
  %s12 = sld [smem:[#allocation0]]
  $region66: #{_qnet_ops_step.1} parent=0
    _
  %s14 = ssub.s32 1, %s12
  %s15 = scalar_select 0, %s14, %s12
  $region1: #{_qnet_ops_step.1} parent=0
    #allocation2 [shape = 'u8[4096]{0}', space=vmem, size = 0x1000, scoped, tag = 'input window, operand 2, single buffered']
    #allocation3 [shape = 's32[1]{0}', space=sflag, size = 0x4, scoped, tag = 'scoped memory for _qnet_ops_step.1']
    #allocation4 [shape = 's32[1]{0}', space=sflag, size = 0x4, scoped, tag = 'scoped memory for _qnet_ops_step.1']
    #allocation5 [shape = 'u8[16384]{0}', space=vmem, size = 0x4000, scoped, tag = 'input window, operand 4, single buffered']
    #allocation6 [shape = 's32[1]{0}', space=sflag, size = 0x4, scoped, tag = 'scoped memory for _qnet_ops_step.1']
    #allocation7 [shape = 'u8[4096]{0}', space=vmem, size = 0x1000, scoped, tag = 'output window, operand 0, single buffered']
    #allocation8 [shape = 'u8[4096]{0}', space=vmem, size = 0x1000, scoped, tag = 'output window, operand 1, single buffered']
    #allocation9 [shape = 's32[1]{0}', space=sflag, size = 0x4, scoped, tag = 'scoped memory for _qnet_ops_step.1']
    #allocation10 [shape = 'u8[4096]{0}', space=vmem, size = 0x1000, scoped, tag = 'output window, operand 2, single buffered']
    %16 = vsyncpa [#allocation3], 0
    %17 = vsyncpa [#allocation6], 0
    %18 = vsyncpa [#allocation4], 0
    %19 = vsyncpa [#allocation9], 0
    // Predicated region
    $region2: #{_qnet_ops_step.1} parent=1 // pred_check
      _
    $region3: #{_qnet_ops_step.1} parent=1 // pred_check_branch
      %21 = sbr.rel (0) target = $region5
    $region4: #{_qnet_ops_step.1} parent=1 // pred_region
      _
    $region5: #{_qnet_ops_step.1} parent=1 // pred_fallthru
      _
    // Predicated region
    $region6: #{_qnet_ops_step.1} parent=1 // pred_check
      _
    $region7: #{_qnet_ops_step.1} parent=1 // pred_check_branch
      %23 = sbr.rel (0) target = $region9
    $region8: #{_qnet_ops_step.1} parent=1 // pred_region
      _
    $region9: #{_qnet_ops_step.1} parent=1 // pred_fallthru
      _
    // Predicated region
    $region10: #{_qnet_ops_step.1} parent=1 // pred_check
      _
    $region11: #{_qnet_ops_step.1} parent=1 // pred_check_branch
      %25 = sbr.rel (0) target = $region13
    $region12: #{_qnet_ops_step.1} parent=1 // pred_region
      %s27 = ssub.s32 128, 128
      %28 = vsyncadd [#allocation3], %s27
      %s30 = sshll.u32 [#allocation2], 4
      %s31 = int_to_ptr.vmem [resolvable:$true] %s30
      %33 = dma.hbm_to_vmem [thread:$0]  %s2, 128, %s31, [#allocation3]
    $region13: #{_qnet_ops_step.1} parent=1 // pred_fallthru
      _
    // Predicated region
    $region14: #{_qnet_ops_step.1} parent=1 // pred_check
      _
    $region15: #{_qnet_ops_step.1} parent=1 // pred_check_branch
      %35 = sbr.rel (0) target = $region17
    $region16: #{_qnet_ops_step.1} parent=1 // pred_region
      _
    $region17: #{_qnet_ops_step.1} parent=1 // pred_fallthru
      _
    // Predicated region
    $region18: #{_qnet_ops_step.1} parent=1 // pred_check
      _
    $region19: #{_qnet_ops_step.1} parent=1 // pred_check_branch
      %37 = sbr.rel (0) target = $region21
    $region20: #{_qnet_ops_step.1} parent=1 // pred_region
      %s39 = ssub.s32 512, 512
      %40 = vsyncadd [#allocation6], %s39
      %s41 = sshll.u32 [#allocation5], 4
      %s42 = int_to_ptr.vmem [resolvable:$true] %s41
      %47 = dma.hbm_to_vmem [thread:$0]  %s4, 512, %s42, [#allocation6], 128, 128, 8
    $region21: #{_qnet_ops_step.1} parent=1 // pred_fallthru
      _
    // Predicated region
    $region22: #{_qnet_ops_step.1} parent=1 // pred_check
      _
    $region23: #{_qnet_ops_step.1} parent=1 // pred_check_branch
      %49 = sbr.rel (0) target = $region25
    $region24: #{_qnet_ops_step.1} parent=1 // pred_region
      _
    $region25: #{_qnet_ops_step.1} parent=1 // pred_fallthru
      _
    // Predicated region
    $region26: #{_qnet_ops_step.1} parent=1 // pred_check
      _
    $region27: #{_qnet_ops_step.1} parent=1 // pred_check_branch
      %51 = sbr.rel (0) target = $region29
    $region28: #{_qnet_ops_step.1} parent=1 // pred_region
      _
    $region29: #{_qnet_ops_step.1} parent=1 // pred_fallthru
      _
    // Predicated region
    $region30: #{_qnet_ops_step.1} parent=1 // pred_check
      _
    $region31: #{_qnet_ops_step.1} parent=1 // pred_check_branch
      %53 = sbr.rel (0) target = $region33
    $region32: #{_qnet_ops_step.1} parent=1 // pred_region
      _
    $region33: #{_qnet_ops_step.1} parent=1 // pred_fallthru
      _
    // Predicated region
    $region34: #{_qnet_ops_step.1} parent=1 // pred_check
      _
    $region35: #{_qnet_ops_step.1} parent=1 // pred_check_branch
      %55 = sbr.rel (0) target = $region37
    $region36: #{_qnet_ops_step.1} parent=1 // pred_region
      %56 = dma.done [#allocation3], 128
    $region37: #{_qnet_ops_step.1} parent=1 // pred_fallthru
      _
    // Predicated region
    $region38: #{_qnet_ops_step.1} parent=1 // pred_check
      _
    $region39: #{_qnet_ops_step.1} parent=1 // pred_check_branch
      %58 = sbr.rel (0) target = $region41
    $region40: #{_qnet_ops_step.1} parent=1 // pred_region
      %59 = dma.done [#allocation6], 512
    $region41: #{_qnet_ops_step.1} parent=1 // pred_fallthru
      _
    %v60 = vld [vmem:[%s0] sm:$0xff]
    %v61 = vld [vmem:[%s1] sm:$0xff]
    %v62 = vld [vmem:[#allocation2] sm:$0xff]
    %v63 = vld [vmem:[%s3] sm:$0xff]
    %v64 = vld [vmem:[%s3 + $0x8] sm:$0xff]
    %v65 = vld [vmem:[%s3 + $0x10] sm:$0xff]
    %v66 = vld [vmem:[%s3 + $0x18] sm:$0xff]
    %v67 = vld [vmem:[#allocation5] sm:$0xff]
    %v68 = vld [vmem:[#allocation5 + $0x8] sm:$0xff]
    %v69 = vld [vmem:[#allocation5 + $0x10] sm:$0xff]
    %v70 = vld [vmem:[#allocation5 + $0x18] sm:$0xff]
    %vm71 = vcmask 261120
    %v73 = vsel %vm71, %v61, 0
    %75 = vmatprep.subr.mxu0 0.0
    %76 = vmatpush1.msra.mxu0 %v67
    %77 = vmatprep.subr.mxu0 0.0
    %78 = vmatpush1.msra.mxu0 %v68
    %79 = vmatprep.subr.mxu0 0.0
    %80 = vmatpush1.msra.mxu0 %v69
    %81 = vmatprep.subr.mxu0 0.0
    %82 = vmatpush1.msra.mxu0 %v70
    %83 = vmatprep.subr.mxu0 0.0
    %84 = vmatpush1.msra.mxu0 0.0
    %85 = vmatprep.subr.mxu0 0.0
    %86 = vmatpush1.msra.mxu0 0.0
    %87 = vmatprep.subr.mxu0 0.0
    %88 = vmatpush1.msra.mxu0 0.0
    %89 = vmatprep.subr.mxu0 0.0
    %90 = vmatpush1.msra.mxu0 0.0
    %91 = vmatprep.subr.mxu0 0.0
    %92 = vmatpush1.msra.mxu0 0.0
    %93 = vmatprep.subr.mxu0 0.0
    %94 = vmatpush1.msra.mxu0 0.0
    %95 = vmatprep.subr.mxu0 0.0
    %96 = vmatpush1.msra.mxu0 0.0
    %97 = vmatprep.subr.mxu0 0.0
    %98 = vmatpush1.msra.mxu0 0.0
    %99 = vmatprep.subr.mxu0 0.0
    %100 = vmatpush1.msra.mxu0 0.0
    %101 = vmatprep.subr.mxu0 0.0
    %102 = vmatpush1.msra.mxu0 0.0
    %103 = vmatprep.subr.mxu0 0.0
    %104 = vmatpush1.msra.mxu0 0.0
    %105 = vmatprep.subr.mxu0 0.0
    %106 = vmatpush1.msra.mxu0 0.0
    %107 = vmatprep.subr.mxu0 0.0
    %108 = vmatpush1.msra.mxu0 0.0
    %109 = vmatprep.subr.mxu0 0.0
    %110 = vmatpush1.msra.mxu0 0.0
    %111 = vmatprep.subr.mxu0 0.0
    %112 = vmatpush1.msra.mxu0 0.0
    %113 = vmatprep.subr.mxu0 0.0
    %114 = vmatpush1.msra.mxu0 0.0
    %115 = vmatprep.subr.mxu0 0.0
    %116 = vmatpush1.msra.mxu0 0.0
    %117 = vmatprep.subr.mxu0 0.0
    %118 = vmatpush1.msra.mxu0 0.0
    %119 = vmatprep.subr.mxu0 0.0
    %120 = vmatpush1.msra.mxu0 0.0
    %121 = vmatprep.subr.mxu0 0.0
    %122 = vmatpush1.msra.mxu0 0.0
    %123 = vmatprep.subr.mxu0 0.0
    %124 = vmatpush1.msra.mxu0 0.0
    %125 = vmatprep.subr.mxu0 0.0
    %126 = vmatpush1.msra.mxu0 0.0
    %127 = vmatprep.subr.mxu0 0.0
    %128 = vmatpush1.msra.mxu0 0.0
    %129 = vmatprep.subr.mxu0 0.0
    %130 = vmatpush1.msra.mxu0 0.0
    %131 = vmatprep.subr.mxu0 0.0
    %132 = vmatpush1.msra.mxu0 0.0
    %133 = vmatprep.subr.mxu0 0.0
    %134 = vmatpush1.msra.mxu0 0.0
    %135 = vmatprep.subr.mxu0 0.0
    %136 = vmatpush1.msra.mxu0 0.0
    %137 = vmatprep.subr.mxu0 0.0
    %138 = vmatpush1.msra.mxu0 0.0
    %139 = vmatprep.mubr.f32.mxu0 0.0
    %140 = vmatmul.mubr.f32.gmra.mrb[0].mxu0 %v73
    %v141 = vpop.f32.mrb[0].mxu0
    %v142 = vadd.f32 0.0, %v141
    %v143 = vpop.f32.mrb[0].mxu0
    %144 = vdwg.mxu0
    %v146 = vsel %vm71, %v60, 0
    %148 = vmatprep.subr.mxu0 0.0
    %149 = vmatpush1.msra.mxu0 %v63
    %150 = vmatprep.subr.mxu0 0.0
    %151 = vmatpush1.msra.mxu0 %v64
    %152 = vmatprep.subr.mxu0 0.0
    %153 = vmatpush1.msra.mxu0 %v65
    %154 = vmatprep.subr.mxu0 0.0
    %155 = vmatpush1.msra.mxu0 %v66
    %156 = vmatprep.subr.mxu0 0.0
    %157 = vmatpush1.msra.mxu0 0.0
    %158 = vmatprep.subr.mxu0 0.0
    %159 = vmatpush1.msra.mxu0 0.0
    %160 = vmatprep.subr.mxu0 0.0
    %161 = vmatpush1.msra.mxu0 0.0
    %162 = vmatprep.subr.mxu0 0.0
    %163 = vmatpush1.msra.mxu0 0.0
    %164 = vmatprep.subr.mxu0 0.0
    %165 = vmatpush1.msra.mxu0 0.0
    %166 = vmatprep.subr.mxu0 0.0
    %167 = vmatpush1.msra.mxu0 0.0
    %168 = vmatprep.subr.mxu0 0.0
    %169 = vmatpush1.msra.mxu0 0.0
    %170 = vmatprep.subr.mxu0 0.0
    %171 = vmatpush1.msra.mxu0 0.0
    %172 = vmatprep.subr.mxu0 0.0
    %173 = vmatpush1.msra.mxu0 0.0
    %174 = vmatprep.subr.mxu0 0.0
    %175 = vmatpush1.msra.mxu0 0.0
    %176 = vmatprep.subr.mxu0 0.0
    %177 = vmatpush1.msra.mxu0 0.0
    %178 = vmatprep.subr.mxu0 0.0
    %179 = vmatpush1.msra.mxu0 0.0
    %180 = vmatprep.subr.mxu0 0.0
    %181 = vmatpush1.msra.mxu0 0.0
    %182 = vmatprep.subr.mxu0 0.0
    %183 = vmatpush1.msra.mxu0 0.0
    %184 = vmatprep.subr.mxu0 0.0
    %185 = vmatpush1.msra.mxu0 0.0
    %186 = vmatprep.subr.mxu0 0.0
    %187 = vmatpush1.msra.mxu0 0.0
    %188 = vmatprep.subr.mxu0 0.0
    %189 = vmatpush1.msra.mxu0 0.0
    %190 = vmatprep.subr.mxu0 0.0
    %191 = vmatpush1.msra.mxu0 0.0
    %192 = vmatprep.subr.mxu0 0.0
    %193 = vmatpush1.msra.mxu0 0.0
    %194 = vmatprep.subr.mxu0 0.0
    %195 = vmatpush1.msra.mxu0 0.0
    %196 = vmatprep.subr.mxu0 0.0
    %197 = vmatpush1.msra.mxu0 0.0
    %198 = vmatprep.subr.mxu0 0.0
    %199 = vmatpush1.msra.mxu0 0.0
    %200 = vmatprep.subr.mxu0 0.0
    %201 = vmatpush1.msra.mxu0 0.0
    %202 = vmatprep.subr.mxu0 0.0
    %203 = vmatpush1.msra.mxu0 0.0
    %204 = vmatprep.subr.mxu0 0.0
    %205 = vmatpush1.msra.mxu0 0.0
    %206 = vmatprep.subr.mxu0 0.0
    %207 = vmatpush1.msra.mxu0 0.0
    %208 = vmatprep.subr.mxu0 0.0
    %209 = vmatpush1.msra.mxu0 0.0
    %210 = vmatprep.subr.mxu0 0.0
    %211 = vmatpush1.msra.mxu0 0.0
    %212 = vmatprep.mubr.f32.mxu0 0.0
    %213 = vmatmul.mubr.f32.gmra.mrb[0].mxu0 %v146
    %v214 = vpop.f32.mrb[0].mxu0
    %v215 = vadd.f32 %v142, %v214
    %v216 = vpop.f32.mrb[0].mxu0
    %217 = vdwg.mxu0
    %v218 = vld [vmem:[%s5] sm:$0x1]
    %v220 = vlaneseq
    %v221 = vshrl.u32 %v220, 7
    %v222 = vsub.s32 0, %v221
    %v223 = vrot.slane %v218, %v222
    %v225 = vadd.f32 %v215, %v223
    %v226 = vxor.u32 %v225, 2147483648
    %v227 = vmul.f32 %v226, 1.442695
    %v228 = vpow.pop %v227
    %v229 = vadd.f32 %v228, 1.0
    %v230 = vrcp.pop %v229
    %v231 = vmul.f32 1.0, %v230
    %v232 = vtanh.pop %v225
    %234 = vrot.lane.b32.xlu0 %v62, 32
    %v235 = vpop.permute.xlu0 %234
    %v237 = vmul.f32 %v231, %v235
    %239 = vrot.lane.b32.xlu0 %v232, 64
    %v240 = vpop.permute.xlu0 %239
    %v242 = vmul.f32 %v231, %v240
    %244 = vrot.lane.b32.xlu0 %v242, 32
    %v245 = vpop.permute.xlu0 %244
    %v247 = vadd.f32 %v237, %v245
    %v248 = vtanh.pop %v247
    %250 = vrot.lane.b32.xlu0 %v248, 64
    %v251 = vpop.permute.xlu0 %250
    %v253 = vmul.f32 %v231, %v251
    %v254 = vld [vmem:[%s6] sm:$0xff]
    %v255 = vld [vmem:[%s6 + $0x8] sm:$0xff]
    %v256 = vld [vmem:[%s6 + $0x10] sm:$0xff]
    %v257 = vld [vmem:[%s6 + $0x18] sm:$0xff]
    %v258 = vld [vmem:[%s7] sm:$0x1]
    %v260 = vlaneseq
    %v261 = vshrl.u32 %v260, 7
    %v262 = vsub.s32 0, %v261
    %v263 = vrot.slane %v258, %v262
    %266 = vrot.lane.b32.xlu0 %v253, 32
    %v267 = vpop.permute.xlu0 %266
    %v268 = vsel %vm71, %v267, 0
    %270 = vmatprep.subr.mxu0 0.0
    %271 = vmatpush1.msra.mxu0 %v254
    %272 = vmatprep.subr.mxu0 0.0
    %273 = vmatpush1.msra.mxu0 %v255
    %274 = vmatprep.subr.mxu0 0.0
    %275 = vmatpush1.msra.mxu0 %v256
    %276 = vmatprep.subr.mxu0 0.0
    %277 = vmatpush1.msra.mxu0 %v257
    %278 = vmatprep.subr.mxu0 0.0
    %279 = vmatpush1.msra.mxu0 0.0
    %280 = vmatprep.subr.mxu0 0.0
    %281 = vmatpush1.msra.mxu0 0.0
    %282 = vmatprep.subr.mxu0 0.0
    %283 = vmatpush1.msra.mxu0 0.0
    %284 = vmatprep.subr.mxu0 0.0
    %285 = vmatpush1.msra.mxu0 0.0
    %286 = vmatprep.subr.mxu0 0.0
    %287 = vmatpush1.msra.mxu0 0.0
    %288 = vmatprep.subr.mxu0 0.0
    %289 = vmatpush1.msra.mxu0 0.0
    %290 = vmatprep.subr.mxu0 0.0
    %291 = vmatpush1.msra.mxu0 0.0
    %292 = vmatprep.subr.mxu0 0.0
    %293 = vmatpush1.msra.mxu0 0.0
    %294 = vmatprep.subr.mxu0 0.0
    %295 = vmatpush1.msra.mxu0 0.0
    %296 = vmatprep.subr.mxu0 0.0
    %297 = vmatpush1.msra.mxu0 0.0
    %298 = vmatprep.subr.mxu0 0.0
    %299 = vmatpush1.msra.mxu0 0.0
    %300 = vmatprep.subr.mxu0 0.0
    %301 = vmatpush1.msra.mxu0 0.0
    %302 = vmatprep.subr.mxu0 0.0
    %303 = vmatpush1.msra.mxu0 0.0
    %304 = vmatprep.subr.mxu0 0.0
    %305 = vmatpush1.msra.mxu0 0.0
    %306 = vmatprep.subr.mxu0 0.0
    %307 = vmatpush1.msra.mxu0 0.0
    %308 = vmatprep.subr.mxu0 0.0
    %309 = vmatpush1.msra.mxu0 0.0
    %310 = vmatprep.subr.mxu0 0.0
    %311 = vmatpush1.msra.mxu0 0.0
    %312 = vmatprep.subr.mxu0 0.0
    %313 = vmatpush1.msra.mxu0 0.0
    %314 = vmatprep.subr.mxu0 0.0
    %315 = vmatpush1.msra.mxu0 0.0
    %316 = vmatprep.subr.mxu0 0.0
    %317 = vmatpush1.msra.mxu0 0.0
    %318 = vmatprep.subr.mxu0 0.0
    %319 = vmatpush1.msra.mxu0 0.0
    %320 = vmatprep.subr.mxu0 0.0
    %321 = vmatpush1.msra.mxu0 0.0
    %322 = vmatprep.subr.mxu0 0.0
    %323 = vmatpush1.msra.mxu0 0.0
    %324 = vmatprep.subr.mxu0 0.0
    %325 = vmatpush1.msra.mxu0 0.0
    %326 = vmatprep.subr.mxu0 0.0
    %327 = vmatpush1.msra.mxu0 0.0
    %328 = vmatprep.subr.mxu0 0.0
    %329 = vmatpush1.msra.mxu0 0.0
    %330 = vmatprep.subr.mxu0 0.0
    %331 = vmatpush1.msra.mxu0 0.0
    %332 = vmatprep.subr.mxu0 0.0
    %333 = vmatpush1.msra.mxu0 0.0
    %334 = vmatprep.mubr.f32.mxu0 0.0
    %335 = vmatmul.mubr.f32.gmra.mrb[0].mxu0 %v268
    %v336 = vpop.f32.mrb[0].mxu0
    %v337 = vadd.f32 %v263, %v336
    %v338 = vpop.f32.mrb[0].mxu0
    %339 = vdwg.mxu0
    %341 = vst.msk [vmem:[#allocation7] sm:$0xff] %vm71, %v267
    %343 = vrot.lane.b32.xlu0 %v247, 96
    %v344 = vpop.permute.xlu0 %343
    %346 = vst.msk [vmem:[#allocation8] sm:$0xff] %vm71, %v344
    %vm347 = vcmask 130048
    %348 = vst.msk [vmem:[#allocation10] sm:$0xff] %vm347, %v337
    // Predicated region
    $region42: #{_qnet_ops_step.1} parent=1 // pred_check
      _
    $region43: #{_qnet_ops_step.1} parent=1 // pred_check_branch
      %350 = sbr.rel (0) target = $region45
    $region44: #{_qnet_ops_step.1} parent=1 // pred_region
      %s352 = ssub.s32 128, 128
      %353 = vsyncadd [#allocation4], %s352
      %s355 = sshll.u32 [#allocation7], 4
      %s356 = int_to_ptr.vmem [resolvable:$true] %s355
      %358 = dma.vmem_to_hbm [thread:$0]  %s356, 128, %s8, [#allocation4]
    $region45: #{_qnet_ops_step.1} parent=1 // pred_fallthru
      _
    // Predicated region
    $region46: #{_qnet_ops_step.1} parent=1 // pred_check
      _
    $region47: #{_qnet_ops_step.1} parent=1 // pred_check_branch
      %360 = sbr.rel (0) target = $region49
    $region48: #{_qnet_ops_step.1} parent=1 // pred_region
      %s362 = ssub.s32 128, 128
      %363 = vsyncadd [#allocation9], %s362
      %s365 = sshll.u32 [#allocation8], 4
      %s366 = int_to_ptr.vmem [resolvable:$true] %s365
      %368 = dma.vmem_to_hbm [thread:$0]  %s366, 128, %s9, [#allocation9]
    $region49: #{_qnet_ops_step.1} parent=1 // pred_fallthru
      _
    // Predicated region
    $region50: #{_qnet_ops_step.1} parent=1 // pred_check
      _
    $region51: #{_qnet_ops_step.1} parent=1 // pred_check_branch
      %370 = sbr.rel (0) target = $region53
    $region52: #{_qnet_ops_step.1} parent=1 // pred_region
      %s372 = ssub.s32 128, 128
      %373 = vsyncadd [#allocation9], %s372
      %s375 = sshll.u32 [#allocation10], 4
      %s376 = int_to_ptr.vmem [resolvable:$true] %s375
      %378 = dma.vmem_to_hbm [thread:$0]  %s376, 128, %s10, [#allocation9]
    $region53: #{_qnet_ops_step.1} parent=1 // pred_fallthru
      _
    // Predicated region
    $region54: #{_qnet_ops_step.1} parent=1 // pred_check
      _
    $region55: #{_qnet_ops_step.1} parent=1 // pred_check_branch
      %380 = sbr.rel (0) target = $region57
    $region56: #{_qnet_ops_step.1} parent=1 // pred_region
      %381 = dma.done [#allocation4], 128
    $region57: #{_qnet_ops_step.1} parent=1 // pred_fallthru
      _
    // Predicated region
    $region58: #{_qnet_ops_step.1} parent=1 // pred_check
      _
    $region59: #{_qnet_ops_step.1} parent=1 // pred_check_branch
      %383 = sbr.rel (0) target = $region61
    $region60: #{_qnet_ops_step.1} parent=1 // pred_region
      %384 = dma.done [#allocation9], 128
    $region61: #{_qnet_ops_step.1} parent=1 // pred_fallthru
      _
    // Predicated region
    $region62: #{_qnet_ops_step.1} parent=1 // pred_check
      _
    $region63: #{_qnet_ops_step.1} parent=1 // pred_check_branch
      %386 = sbr.rel (0) target = $region65
    $region64: #{_qnet_ops_step.1} parent=1 // pred_region
      %387 = dma.done [#allocation9], 128
    $region65: #{_qnet_ops_step.1} parent=1 // pred_fallthru
      _
    %388 = vsyncpa [#allocation3], 1
    %389 = vsyncpa [#allocation6], 1
    %390 = vsyncpa [#allocation4], 1
    %391 = vsyncpa [#allocation9], 1

</llo_original>
